<compile_context>
chip_gen: v5e
topology: v5e:2x2
jax: 0.10.0
libtpu: 0.0.40
codegen_flags: <defaults>
</compile_context>

<pallas_src>
import jax
import jax.numpy as jnp
from jax import lax
from jax.experimental import pallas as pl
from jax.experimental.pallas import tpu as pltpu

EPS = 1e-5
CPG = 4  # channels per group: GroupNorm(out_ch // 4, out_ch)


def decoder_conv_kernel(p_ref, w_ref, par_ref, agg_ref, o_ref):
    # p_ref:   (n_blk, 9*Cin, HW) bf16  im2col patches for n_blk batch elements
    # w_ref:   (Cout, 9*Cin)      bf16  conv weight, taps flattened to match patches
    # par_ref: (Cout, 3)          f32   packed [bias | gamma | beta] columns
    # agg_ref: (Cout, Cout)       f32   agg[c,c'] = 1 iff c, c' in the same GN group
    # o_ref:   (n_blk, Cout, HW)        output (NCHW row-major after a free reshape)
    n_blk = p_ref.shape[0]
    HW = o_ref.shape[2]

    w = w_ref[...]
    params = par_ref[...]
    bias = params[:, 0:1]     # (Cout, 1) broadcasts over lanes
    gamma = params[:, 1:2]
    beta = params[:, 2:3]
    agg = agg_ref[...]
    inv_n = 1.0 / float(CPG * HW)

    # Static unroll: all n_blk images share one grid step (fewer ~0.35us step overheads).
    for n in range(n_blk):
        # --- Conv2d(3x3, pad=1): one MXU matmul, K = 9*Cin, f32 accumulation ---
        acc = jnp.dot(w, p_ref[n], preferred_element_type=jnp.float32)   # (Cout, HW)
        acc = acc + bias

        # --- GroupNorm: lane-reduce FIRST, then tiny (Cout,Cout)@(Cout,1) group agg ---
        row_sum = jnp.sum(acc, axis=1, keepdims=True)                    # (Cout, 1)
        mean = jnp.dot(agg, row_sum, preferred_element_type=jnp.float32) * inv_n
        centered = acc - mean
        row_ss = jnp.sum(centered * centered, axis=1, keepdims=True)     # (Cout, 1)
        var = jnp.dot(agg, row_ss, preferred_element_type=jnp.float32) * inv_n
        inv_std = lax.rsqrt(var + EPS)

        y = centered * (inv_std * gamma) + beta
        o_ref[n] = jnp.maximum(y, 0.0).astype(o_ref.dtype)               # ReLU, unmasked store


def decoder_conv(x_nchw, w_oihw, b, gamma, beta, *, n_blk=None, out_dtype=jnp.float32):
    """Pallas implementation of DecoderConv.forward. Input/output are NCHW."""
    N, Cin, H, W = x_nchw.shape
    Cout = w_oihw.shape[0]
    assert Cout % CPG == 0
    HW = H * W
    K9 = 9 * Cin

    if n_blk is None:
        # Fold batch into each block, but keep >=2 grid steps when N allows so both
        # v7x TensorCores stay busy (on v5e/v6e the grid is serial; 2 steps is cheap).
        n_blk = max(1, N // 2)
        while N % n_blk:
            n_blk -= 1
    assert N % n_blk == 0 and n_blk >= 1

    # im2col in the wrapper (cheap XLA slices/concat at these sizes): (N, 9*Cin, HW),
    # K index = tap*Cin + cin with tap = kh*3 + kw.
    # (At realistic decoder sizes fuse this into the kernel -- see header note.)
    xp = jnp.pad(x_nchw.astype(jnp.float32), ((0, 0), (0, 0), (1, 1), (1, 1)))
    taps = [xp[:, :, kh:kh + H, kw:kw + W] for kh in range(3) for kw in range(3)]
    patches = jnp.stack(taps, axis=1).reshape(N, K9, HW).astype(jnp.bfloat16)

    # (Cout, Cin, 3, 3) -> (Cout, 3, 3, Cin) -> (Cout, 9*Cin); K index matches patches.
    w2 = jnp.transpose(w_oihw, (0, 2, 3, 1)).reshape(Cout, K9).astype(jnp.bfloat16)

    # Packed parameter block: columns = [bias, gamma, beta].
    params = jnp.stack([b, gamma, beta], axis=1).astype(jnp.float32)      # (Cout, 3)

    ch = jnp.arange(Cout)
    agg = (ch[:, None] // CPG == ch[None, :] // CPG).astype(jnp.float32)  # (Cout, Cout)

    out = pl.pallas_call(
        decoder_conv_kernel,
        out_shape=jax.ShapeDtypeStruct((N, Cout, HW), out_dtype),
        grid=(N // n_blk,),
        in_specs=[
            pl.BlockSpec((n_blk, K9, HW), lambda g: (g, 0, 0)),
            pl.BlockSpec((Cout, K9), lambda g: (0, 0)),
            pl.BlockSpec((Cout, 3), lambda g: (0, 0)),
            pl.BlockSpec((Cout, Cout), lambda g: (0, 0)),
        ],
        out_specs=pl.BlockSpec((n_blk, Cout, HW), lambda g: (g, 0, 0)),
        compiler_params=pltpu.CompilerParams(dimension_semantics=("parallel",)),
    )(patches, w2, params, agg)

    return out.reshape(N, Cout, H, W)  # free reshape: already NCHW row-major


def decoder_conv_reference(x, w, b, gamma, beta, matmul_dtype=jnp.float32):
    """Plain-JAX reference matching PyTorch semantics (optionally bf16 conv operands)."""
    y = lax.conv_general_dilated(
        x.astype(matmul_dtype), w.astype(matmul_dtype),
        window_strides=(1, 1), padding="SAME",
        dimension_numbers=("NCHW", "OIHW", "NCHW"),
        preferred_element_type=jnp.float32)
    y = y + b.reshape(1, -1, 1, 1).astype(jnp.float32)
    N, C, H, W = y.shape
    G = C // CPG
    yg = y.reshape(N, G, CPG, H, W)
    mean = yg.mean(axis=(2, 3, 4), keepdims=True)
    var = yg.var(axis=(2, 3, 4), keepdims=True)   # biased, like torch GroupNorm
    yn = (yg - mean) / jnp.sqrt(var + EPS)
    yn = yn.reshape(N, C, H, W) * gamma.reshape(1, -1, 1, 1) + beta.reshape(1, -1, 1, 1)
    return jnp.maximum(yn, 0.0)


if __name__ == "__main__":
    # Small shapes consistent with the module: N=2, in_ch=4, out_ch=8, 16x16 spatial.
    N, IN_CH, OUT_CH, H, W = 2, 4, 8, 16, 16

    key = jax.random.PRNGKey(0)
    kx, kw, kb, kg, kbe = jax.random.split(key, 5)

    x = jax.random.normal(kx, (N, IN_CH, H, W), jnp.float32)
    w = jax.random.normal(kw, (OUT_CH, IN_CH, 3, 3), jnp.float32) * 0.1
    b = jax.random.normal(kb, (OUT_CH,), jnp.float32) * 0.1
    gamma = 1.0 + 0.1 * jax.random.normal(kg, (OUT_CH,), jnp.float32)
    beta = 0.1 * jax.random.normal(kbe, (OUT_CH,), jnp.float32)

    ref_bf16 = jax.block_until_ready(
        decoder_conv_reference(x, w, b, gamma, beta, matmul_dtype=jnp.bfloat16))
    ref_f32 = jax.block_until_ready(decoder_conv_reference(x, w, b, gamma, beta))

    # Exercise both the default (>=2 parallel grid steps) and the fully batch-folded
    # (single grid step, n_blk=N) configurations.
    for nb in (None, N):
        out = jax.block_until_ready(decoder_conv(x, w, b, gamma, beta, n_blk=nb))
        assert out.shape == (N, OUT_CH, H, W), out.shape
        # Tight check vs a reference with the same bf16-operand / f32-accumulation conv.
        assert jnp.allclose(out, ref_bf16, atol=5e-3, rtol=5e-3), \
            (nb, float(jnp.max(jnp.abs(out - ref_bf16))))
        # Loose check vs the pure-f32 PyTorch-semantics reference.
        assert jnp.allclose(out, ref_f32, atol=5e-2, rtol=5e-2), \
            (nb, float(jnp.max(jnp.abs(out - ref_f32))))

    print("KERNEL_OK")
</pallas_src>

<mosaic_0001>
module attributes {stable_mosaic.version = 11 : i64} {
  func.func @decoder_conv_kernel(%arg0: i32, %arg1: memref<1x36x256xbf16, #tpu.memory_space<vmem>>, %arg2: memref<8x36xbf16, #tpu.memory_space<vmem>>, %arg3: memref<8x3xf32, #tpu.memory_space<vmem>>, %arg4: memref<8x8xf32, #tpu.memory_space<vmem>>, %arg5: memref<1x8x256xf32, #tpu.memory_space<vmem>>) attributes {dimension_semantics = [#tpu.dimension_semantics<parallel>], iteration_bounds = array<i64: 2>, scalar_prefetch = 0 : i64, scratch_operands = 0 : i64, tpu.core_type = #tpu.core_type<tc>, window_params = [{transform_indices = @transform_0, window_bounds = array<i64: 1, 36, 256>}, {pipeline_mode = #tpu.pipeline_mode<synchronous>, transform_indices = @transform_1, window_bounds = array<i64: 8, 36>}, {pipeline_mode = #tpu.pipeline_mode<synchronous>, transform_indices = @transform_2, window_bounds = array<i64: 8, 3>}, {pipeline_mode = #tpu.pipeline_mode<synchronous>, transform_indices = @transform_3, window_bounds = array<i64: 8, 8>}, {transform_indices = @transform_4, window_bounds = array<i64: 1, 8, 256>}]} {
    %c0 = arith.constant 0 : index
    %c0_0 = arith.constant 0 : index
    %0 = vector.load %arg2[%c0, %c0_0] : memref<8x36xbf16, #tpu.memory_space<vmem>>, vector<8x36xbf16>
    %c0_1 = arith.constant 0 : index
    %c0_2 = arith.constant 0 : index
    %1 = vector.load %arg3[%c0_1, %c0_2] : memref<8x3xf32, #tpu.memory_space<vmem>>, vector<8x3xf32>
    %2 = vector.extract_strided_slice %1 {offsets = [0, 0], sizes = [8, 1], strides = [1, 1]} : vector<8x3xf32> to vector<8x1xf32>
    %3 = vector.extract_strided_slice %1 {offsets = [0, 1], sizes = [8, 1], strides = [1, 1]} : vector<8x3xf32> to vector<8x1xf32>
    %4 = vector.extract_strided_slice %1 {offsets = [0, 2], sizes = [8, 1], strides = [1, 1]} : vector<8x3xf32> to vector<8x1xf32>
    %c0_3 = arith.constant 0 : index
    %c0_4 = arith.constant 0 : index
    %5 = vector.load %arg4[%c0_3, %c0_4] : memref<8x8xf32, #tpu.memory_space<vmem>>, vector<8x8xf32>
    %c0_5 = arith.constant 0 : index
    %c0_6 = arith.constant 0 : index
    %c0_7 = arith.constant 0 : index
    %6 = vector.load %arg1[%c0_5, %c0_6, %c0_7] : memref<1x36x256xbf16, #tpu.memory_space<vmem>>, vector<1x36x256xbf16>
    %7 = vector.shape_cast %6 : vector<1x36x256xbf16> to vector<36x256xbf16>
    %cst = arith.constant dense<0.000000e+00> : vector<8x256xf32>
    %8 = tpu.matmul %0, %7, %cst {dimension_numbers = #tpu.dot_dimension_numbers<[1], [0], [0], [1], [0, 0, 1, 1], [], []>} : vector<8x36xbf16>, vector<36x256xbf16>, vector<8x256xf32> -> vector<8x256xf32>
    %9 = vector.broadcast %2 : vector<8x1xf32> to vector<8x256xf32>
    %10 = arith.addf %8, %9 : vector<8x256xf32>
    %cst_8 = arith.constant dense<0.000000e+00> : vector<8xf32>
    %11 = vector.multi_reduction <add>, %10, %cst_8 [1] : vector<8x256xf32> to vector<8xf32>
    %12 = vector.shape_cast %11 : vector<8xf32> to vector<8x1xf32>
    %cst_9 = arith.constant dense<0.000000e+00> : vector<8x1xf32>
    %13 = tpu.matmul %5, %12, %cst_9 {dimension_numbers = #tpu.dot_dimension_numbers<[1], [0], [0], [1], [0, 0, 1, 1], [], []>} : vector<8x8xf32>, vector<8x1xf32>, vector<8x1xf32> -> vector<8x1xf32>
    %cst_10 = arith.constant 9.765625E-4 : f32
    %14 = vector.broadcast %cst_10 : f32 to vector<8x1xf32>
    %15 = arith.mulf %13, %14 : vector<8x1xf32>
    %16 = vector.broadcast %15 : vector<8x1xf32> to vector<8x256xf32>
    %17 = arith.subf %10, %16 : vector<8x256xf32>
    %18 = arith.mulf %17, %17 : vector<8x256xf32>
    %cst_11 = arith.constant dense<0.000000e+00> : vector<8xf32>
    %19 = vector.multi_reduction <add>, %18, %cst_11 [1] : vector<8x256xf32> to vector<8xf32>
    %20 = vector.shape_cast %19 : vector<8xf32> to vector<8x1xf32>
    %cst_12 = arith.constant dense<0.000000e+00> : vector<8x1xf32>
    %21 = tpu.matmul %5, %20, %cst_12 {dimension_numbers = #tpu.dot_dimension_numbers<[1], [0], [0], [1], [0, 0, 1, 1], [], []>} : vector<8x8xf32>, vector<8x1xf32>, vector<8x1xf32> -> vector<8x1xf32>
    %cst_13 = arith.constant 9.765625E-4 : f32
    %22 = vector.broadcast %cst_13 : f32 to vector<8x1xf32>
    %23 = arith.mulf %21, %22 : vector<8x1xf32>
    %cst_14 = arith.constant 9.99999974E-6 : f32
    %24 = vector.broadcast %cst_14 : f32 to vector<8x1xf32>
    %25 = arith.addf %23, %24 : vector<8x1xf32>
    %26 = math.rsqrt %25 : vector<8x1xf32>
    %27 = arith.mulf %26, %3 : vector<8x1xf32>
    %28 = vector.broadcast %27 : vector<8x1xf32> to vector<8x256xf32>
    %29 = arith.mulf %17, %28 : vector<8x256xf32>
    %30 = vector.broadcast %4 : vector<8x1xf32> to vector<8x256xf32>
    %31 = arith.addf %29, %30 : vector<8x256xf32>
    %cst_15 = arith.constant 0.000000e+00 : f32
    %32 = vector.broadcast %cst_15 : f32 to vector<8x256xf32>
    %33 = arith.maximumf %31, %32 : vector<8x256xf32>
    %c0_16 = arith.constant 0 : index
    %c0_17 = arith.constant 0 : index
    %c0_18 = arith.constant 0 : index
    %34 = vector.load %arg5[%c0_16, %c0_17, %c0_18] : memref<1x8x256xf32, #tpu.memory_space<vmem>>, vector<1x8x256xf32>
    %35 = vector.shape_cast %34 : vector<1x8x256xf32> to vector<8x256xf32>
    %36 = vector.shape_cast %33 : vector<8x256xf32> to vector<1x8x256xf32>
    tpu.vector_store %arg5[%c0_16, %c0_17, %c0_18], %36 {strides = array<i32>} : memref<1x8x256xf32, #tpu.memory_space<vmem>>, vector<1x8x256xf32>,
    return
  }
  func.func @transform_0(%arg0: i32) -> (i32, i32, i32) {
    %c0_i32 = arith.constant 0 : i32
    %c0_i32_0 = arith.constant 0 : i32
    %c0_i32_1 = arith.constant 0 : i32
    return %arg0, %c0_i32, %c0_i32_0 : i32, i32, i32
  }
  func.func @transform_1(%arg0: i32) -> (i32, i32) {
    %c0_i32 = arith.constant 0 : i32
    %c0_i32_0 = arith.constant 0 : i32
    %c0_i32_1 = arith.constant 0 : i32
    return %c0_i32, %c0_i32_0 : i32, i32
  }
  func.func @transform_2(%arg0: i32) -> (i32, i32) {
    %c0_i32 = arith.constant 0 : i32
    %c0_i32_0 = arith.constant 0 : i32
    %c0_i32_1 = arith.constant 0 : i32
    return %c0_i32, %c0_i32_0 : i32, i32
  }
  func.func @transform_3(%arg0: i32) -> (i32, i32) {
    %c0_i32 = arith.constant 0 : i32
    %c0_i32_0 = arith.constant 0 : i32
    %c0_i32_1 = arith.constant 0 : i32
    return %c0_i32, %c0_i32_0 : i32, i32
  }
  func.func @transform_4(%arg0: i32) -> (i32, i32, i32) {
    %c0_i32 = arith.constant 0 : i32
    %c0_i32_0 = arith.constant 0 : i32
    %c0_i32_1 = arith.constant 0 : i32
    return %arg0, %c0_i32, %c0_i32_0 : i32, i32, i32
  }
}

</mosaic_0001>

<llo_original>
// kernel: tpu_custom_call.1
$region0: #{tpu_custom_call.1}
  #allocation0 [shape = 'u32[]', space=smem, size = 0x4, offset = 0x4, fixed_abs, tag = 'smem constant byte address 0x4 - core index']
  #allocation1 [shape = 'u32[72,128]{1,0:T(1,128)}', space=vmem, size = 0x9000, scoped, tag = 'internal scratch']
  %s0 = inlined_call_operand.vmem [shape: bf16[2,36,256], index: 0, kind: input, shape index: {}]
  %s1 = inlined_call_operand.vmem [shape: bf16[8,36], index: 1, kind: input, shape index: {}]
  %s2 = inlined_call_operand.vmem [shape: f32[8,3], index: 2, kind: input, shape index: {}]
  %s3 = inlined_call_operand.vmem [shape: f32[8,8], index: 3, kind: input, shape index: {}]
  %s4 = inlined_call_operand.hbm [shape: f32[2,8,256], index: 4, kind: output, shape index: {}]
  %s5 = sld [smem:[#allocation0]]
  $region49: #{tpu_custom_call.1} parent=0
    _
  %s7 = ssub.s32 1, %s5
  %s8 = scalar_select 0, %s7, %s5
  $region1: #{tpu_custom_call.1} parent=0
    #allocation2 [shape = 'u8[16384]{0}', space=vmem, size = 0x4000, scoped, tag = 'output window, operand 0']
    #allocation3 [shape = 's32[2]{0}', space=sflag, size = 0x8, scoped, tag = 'scoped memory for tpu_custom_call.1']
    %9 = vsyncpa [#allocation3], 0
    %s10 = scalar_lea.sflag [#allocation3], 1
    %11 = vsyncpa %s10, 0
    loop: start=0, step=1, limit=4
    $region2: #{tpu_custom_call.1} parent=1 // loop_pre_header
      _
    $region3: #{tpu_custom_call.1} parent=1 // loop_header
      %s13 = sphi 0, %s17
      %p14 = scmp.ge.s32.totalorder %s13, 4
      %s23 = sphi 0, %s25
      %s26 = sphi 0, %s23
      %s27 = sphi 0, %s26
      %s43 = sphi 0, %s27
      %s47 = sphi 0, %s47
      %s49 = sphi 0, %s47
      %s50 = sphi 0, %s49
      %s64 = sphi 0, %s50
      %s68 = sphi 0, %s68
      %s70 = sphi 0, %s68
      %s71 = sphi 0, %s70
      %s85 = sphi 0, %s71
      %s89 = sphi 0, %s89
      %s91 = sphi 0, %s89
      %s92 = sphi 0, %s91
      %s106 = sphi 0, %s92
      %s112 = sphi 0, %s114
      %s115 = sphi 0, %s112
      %s116 = sphi 0, %s115
      %s132 = sphi 0, %s116
    $region4: #{tpu_custom_call.1} parent=1 // loop_header_branch
      %16 = sbr.rel (%p14) target = $region8
    $region5: #{tpu_custom_call.1} parent=1 // loop_body
      %s18 = ssub.s32 %s13, 1
      %s19 = ssub.s32 %s13, 2
      %s20 = sadd.s32 %s13, 1
      %s21 = ssub.s32 %s13, %s20
      %p22 = scmp.eq.s32.totalorder %s21, 0
      %s24 = sadd.s32 %s23, 1
      %s25 = scalar_select %p22, %s23, %s24
      %p28 = pneg %p22
      %p29 = scmp.eq.s32.totalorder %s13, 1
      %p30 = por %p28, %p29
      %p31 = scmp.ne.s32.totalorder %s23, %s26
      %p32 = scmp.eq.s32.totalorder %s13, 0
      %p33 = por %p31, %p32
      %p34 = scmp.ne.s32.totalorder %s23, %s26
      %p35 = scmp.eq.s32.totalorder %s18, 1
      %p36 = por %p34, %p35
      %p37 = scmp.ne.s32.totalorder %s26, %s27
      %p38 = scmp.eq.s32.totalorder %s18, 0
      %p39 = por %p37, %p38
      %p40 = scmp.ne.s32.totalorder %s26, %s27
      %p41 = scmp.eq.s32.totalorder %s19, 1
      %p42 = por %p40, %p41
      %p44 = scmp.ne.s32.totalorder %s27, %s43
      %p45 = scmp.eq.s32.totalorder %s19, 0
      %p46 = por %p44, %p45
      %s48 = sadd.s32 %s47, 1
      %p51 = scmp.eq.s32.totalorder %s13, 1
      %p52 = scmp.ne.s32.totalorder %s47, %s49
      %p53 = scmp.eq.s32.totalorder %s13, 0
      %p54 = por %p52, %p53
      %p55 = scmp.ne.s32.totalorder %s47, %s49
      %p56 = scmp.eq.s32.totalorder %s18, 1
      %p57 = por %p55, %p56
      %p58 = scmp.ne.s32.totalorder %s49, %s50
      %p59 = scmp.eq.s32.totalorder %s18, 0
      %p60 = por %p58, %p59
      %p61 = scmp.ne.s32.totalorder %s49, %s50
      %p62 = scmp.eq.s32.totalorder %s19, 1
      %p63 = por %p61, %p62
      %p65 = scmp.ne.s32.totalorder %s50, %s64
      %p66 = scmp.eq.s32.totalorder %s19, 0
      %p67 = por %p65, %p66
      %s69 = sadd.s32 %s68, 1
      %p72 = scmp.eq.s32.totalorder %s13, 1
      %p73 = scmp.ne.s32.totalorder %s68, %s70
      %p74 = scmp.eq.s32.totalorder %s13, 0
      %p75 = por %p73, %p74
      %p76 = scmp.ne.s32.totalorder %s68, %s70
      %p77 = scmp.eq.s32.totalorder %s18, 1
      %p78 = por %p76, %p77
      %p79 = scmp.ne.s32.totalorder %s70, %s71
      %p80 = scmp.eq.s32.totalorder %s18, 0
      %p81 = por %p79, %p80
      %p82 = scmp.ne.s32.totalorder %s70, %s71
      %p83 = scmp.eq.s32.totalorder %s19, 1
      %p84 = por %p82, %p83
      %p86 = scmp.ne.s32.totalorder %s71, %s85
      %p87 = scmp.eq.s32.totalorder %s19, 0
      %p88 = por %p86, %p87
      %s90 = sadd.s32 %s89, 1
      %p93 = scmp.eq.s32.totalorder %s13, 1
      %p94 = scmp.ne.s32.totalorder %s89, %s91
      %p95 = scmp.eq.s32.totalorder %s13, 0
      %p96 = por %p94, %p95
      %p97 = scmp.ne.s32.totalorder %s89, %s91
      %p98 = scmp.eq.s32.totalorder %s18, 1
      %p99 = por %p97, %p98
      %p100 = scmp.ne.s32.totalorder %s91, %s92
      %p101 = scmp.eq.s32.totalorder %s18, 0
      %p102 = por %p100, %p101
      %p103 = scmp.ne.s32.totalorder %s91, %s92
      %p104 = scmp.eq.s32.totalorder %s19, 1
      %p105 = por %p103, %p104
      %p107 = scmp.ne.s32.totalorder %s92, %s106
      %p108 = scmp.eq.s32.totalorder %s19, 0
      %p109 = por %p107, %p108
      %s110 = ssub.s32 %s13, %s20
      %p111 = scmp.eq.s32.totalorder %s110, 0
      %s113 = sadd.s32 %s112, 1
      %s114 = scalar_select %p111, %s112, %s113
      %p117 = pneg %p111
      %p118 = scmp.eq.s32.totalorder %s13, 1
      %p119 = por %p117, %p118
      %p120 = scmp.ne.s32.totalorder %s112, %s115
      %p121 = scmp.eq.s32.totalorder %s13, 0
      %p122 = por %p120, %p121
      %p123 = scmp.ne.s32.totalorder %s112, %s115
      %p124 = scmp.eq.s32.totalorder %s18, 1
      %p125 = por %p123, %p124
      %p126 = scmp.ne.s32.totalorder %s115, %s116
      %p127 = scmp.eq.s32.totalorder %s18, 0
      %p128 = por %p126, %p127
      %p129 = scmp.ne.s32.totalorder %s115, %s116
      %p130 = scmp.eq.s32.totalorder %s19, 1
      %p131 = por %p129, %p130
      %p133 = scmp.ne.s32.totalorder %s116, %s132
      %p134 = scmp.eq.s32.totalorder %s19, 0
      %p135 = por %p133, %p134
      %p136 = scmp.le.s32.totalorder 1, %s13
      %p137 = scmp.lt.s32.totalorder %s13, 3
      %p138 = pnand %p136, %p137
      %p139 = pneg %p138
      // Predicated region
      $region9: #{tpu_custom_call.1} parent=5 // pred_check
        _
      $region10: #{tpu_custom_call.1} parent=5 // pred_check_branch
        %141 = sbr.rel (%p138) target = $region12
      $region11: #{tpu_custom_call.1} parent=5 // pred_region
        %s142 = ssub.s32 %s13, 1
        // Predicated region
        $region13: #{tpu_custom_call.1} parent=11 // pred_check
          %p143 = pneg %p60
        $region14: #{tpu_custom_call.1} parent=11 // pred_check_branch
          %145 = sbr.rel (%p143) target = $region16
        $region15: #{tpu_custom_call.1} parent=11 // pred_region
          _
        $region16: #{tpu_custom_call.1} parent=11 // pred_fallthru
          _
        // Predicated region
        $region17: #{tpu_custom_call.1} parent=11 // pred_check
          %p146 = pneg %p81
        $region18: #{tpu_custom_call.1} parent=11 // pred_check_branch
          %148 = sbr.rel (%p146) target = $region20
        $region19: #{tpu_custom_call.1} parent=11 // pred_region
          _
        $region20: #{tpu_custom_call.1} parent=11 // pred_fallthru
          _
        // Predicated region
        $region21: #{tpu_custom_call.1} parent=11 // pred_check
          %p149 = pneg %p102
        $region22: #{tpu_custom_call.1} parent=11 // pred_check_branch
          %151 = sbr.rel (%p149) target = $region24
        $region23: #{tpu_custom_call.1} parent=11 // pred_region
          _
        $region24: #{tpu_custom_call.1} parent=11 // pred_fallthru
          _
      $region12: #{tpu_custom_call.1} parent=5 // pred_fallthru
        _
      %p152 = scmp.lt.s32.totalorder %s13, 2
      // Predicated region
      $region25: #{tpu_custom_call.1} parent=5 // pred_check
        %p153 = pneg %p152
      $region26: #{tpu_custom_call.1} parent=5 // pred_check_branch
        %155 = sbr.rel (%p153) target = $region28
      $region27: #{tpu_custom_call.1} parent=5 // pred_region
        // Predicated region
        $region29: #{tpu_custom_call.1} parent=27 // pred_check
          %p156 = pneg %p33
        $region30: #{tpu_custom_call.1} parent=27 // pred_check_branch
          %158 = sbr.rel (%p156) target = $region32
        $region31: #{tpu_custom_call.1} parent=27 // pred_region
          %p159 = scmp.lt.s32.totalorder %s13, 1
          %s160 = scalar_select %p159, %s13, 1
          %s161 = smul.addr %s160, 10
          %s162 = smul.addr %s161, 4
          %s163 = scalar_lea.vmem %s0, %s162
        $region32: #{tpu_custom_call.1} parent=27 // pred_fallthru
          _
      $region28: #{tpu_custom_call.1} parent=5 // pred_fallthru
        _
      %p164 = scmp.le.s32.totalorder 1, %s13
      %p165 = scmp.lt.s32.totalorder %s13, 3
      %p166 = pnand %p164, %p165
      %p167 = pneg %p166
      // Predicated region
      $region33: #{tpu_custom_call.1} parent=5 // pred_check
        _
      $region34: #{tpu_custom_call.1} parent=5 // pred_check_branch
        %169 = sbr.rel (%p166) target = $region36
      $region35: #{tpu_custom_call.1} parent=5 // pred_region
        %s170 = ssub.s32 %s13, 1
        %p171 = scmp.lt.s32.totalorder %s18, 1
        %s172 = scalar_select %p171, %s18, 1
        %s173 = smul.addr %s172, 10
        %s174 = smul.addr %s173, 4
        %s175 = scalar_lea.vmem %s0, %s174
        %p176 = pneg %p39
        %p177 = pneg %p36
        %p178 = pneg %p60
        %p179 = pneg %p57
        %p180 = pneg %p81
        %p181 = pneg %p78
        %p182 = pneg %p102
        %p183 = pneg %p99
        %p184 = pneg %p128
        %p185 = pneg %p125
        %s186 = sand.u32 %s115, 1
        %s187 = scalar_lea.sflag [#allocation3], %s186
        %s188 = sand.u32 %s115, 1
        %s189 = smul.addr %s188, 16
        %s190 = scalar_lea.vmem [#allocation2], %s189
        %p191 = scmp.lt.s32.totalorder %s18, 1
        %s192 = scalar_select %p191, %s18, 1
        %s193 = smul.addr %s192, 10
        %s194 = smul.addr %s193, 4
        %s195 = scalar_lea.vmem %s0, %s194
        %v197 = vld [vmem:[%s1] sm:$0xf]
        %v198 = vld [vmem:[%s2] sm:$0xff]
        %v199 = vld [vmem:[%s3] sm:$0xff]
        %v200 = vld [vmem:[%s195] sm:$0xff]
        %v201 = vld [vmem:[%s195 + $0x8] sm:$0xff]
        %v202 = vld [vmem:[%s195 + $0x10] sm:$0xff]
        %v203 = vld [vmem:[%s195 + $0x18] sm:$0xff]
        %v204 = vld [vmem:[%s195 + $0x20] sm:$0x33]
        %206 = vset.pattern.permute.xlu0 0
        %207 = vperm.xlu0 %206, %v198
        %v208 = vpop.permute.xlu0 %207
        %v215 = vunpack.c.l.b16 %v200
        %v216 = vunpack.c.h.b16 %v200
        %v217 = vunpack.c.l.b16 %v201
        %v218 = vunpack.c.h.b16 %v201
        %v219 = vunpack.c.l.b16 %v202
        %v220 = vunpack.c.h.b16 %v202
        %v221 = vunpack.c.l.b16 %v203
        %v222 = vunpack.c.h.b16 %v203
        %v223 = vunpack.c.l.b16 %v204
        %v224 = vunpack.c.h.b16 %v204
        %v225 = vpack.c.b16 %v217, %v215
        %v226 = vpack.c.b16 %v218, %v216
        %v227 = vpack.c.b16 %v221, %v219
        %v228 = vpack.c.b16 %v222, %v220
        %v229 = vpack.c.b16 %v223, %v223
        %v230 = vpack.c.b16 %v224, %v224
        %vm235 = vcmask 293888
        %v237 = vsel %vm235, %v197, 0
        %vm239 = vcmask 1041408
        %v241 = vsel %vm239, %v229, 0
        %v244 = vsel %vm239, %v230, 0
        %246 = vmatpush.bf16.msra.mxu0 0
        %247 = vmatpush.bf16.msra.mxu0 0
        %248 = vmatpush.bf16.msra.mxu0 0
        %249 = vmatpush.bf16.msra.mxu0 0
        %250 = vmatpush.bf16.msra.mxu0 0
        %251 = vmatpush.bf16.msra.mxu0 %v241
        %252 = vmatpush.bf16.msra.mxu0 %v227
        %253 = vmatpush.bf16.msra.mxu0 %v225
        %254 = vmatmul.bf16.gmra.mxu0 %v237
        %v255 = vpop.f32.mrf.mxu0
        %v256 = vadd.f32 %v208, %v255
        %v257 = vpop.f32.mrf.mxu0
        %258 = vdwg.mxu0
        %259 = vmatpush.bf16.msra.mxu0 0
        %260 = vmatpush.bf16.msra.mxu0 0
        %261 = vmatpush.bf16.msra.mxu0 0
        %262 = vmatpush.bf16.msra.mxu0 0
        %263 = vmatpush.bf16.msra.mxu0 0
        %264 = vmatpush.bf16.msra.mxu0 %v244
        %265 = vmatpush.bf16.msra.mxu0 %v228
        %266 = vmatpush.bf16.msra.mxu0 %v226
        %267 = vmatmul.bf16.gmra.mxu0 %v237
        %v268 = vpop.f32.mrf.mxu0
        %v269 = vadd.f32 %v208, %v268
        %v270 = vpop.f32.mrf.mxu0
        %271 = vdwg.mxu0
        %v272 = vadd.f32 %v256, %v269
        %273 = vadd.xlane.f32.xlu0 %v272
        %v274 = vpop.xlane.xlu0 %273
        %vm275 = vcmask 64512
        %v277 = vsel %vm275, %v199, 0
        %279 = vmatpush.msra.mxu0 0.0
        %280 = vmatpush.msra.mxu0 0.0
        %281 = vmatpush.msra.mxu0 0.0
        %282 = vmatpush.msra.mxu0 0.0
        %283 = vmatpush.msra.mxu0 0.0
        %284 = vmatpush.msra.mxu0 0.0
        %285 = vmatpush.msra.mxu0 0.0
        %286 = vmatpush.msra.mxu0 0.0
        %287 = vmatpush.msra.mxu0 0.0
        %288 = vmatpush.msra.mxu0 0.0
        %289 = vmatpush.msra.mxu0 0.0
        %290 = vmatpush.msra.mxu0 0.0
        %291 = vmatpush.msra.mxu0 0.0
        %292 = vmatpush.msra.mxu0 0.0
        %293 = vmatpush.msra.mxu0 0.0
        %294 = vmatpush.msra.mxu0 %v274
        %295 = vmatmul.f32.gmra.mxu0 %v277
        %v296 = vpop.f32.mrf.mxu0
        %v297 = vadd.f32 0.0, %v296
        %298 = vdwg.mxu0
        %v299 = vmul.f32 %v297, 0.0009765625
        %301 = vset.pattern.permute.xlu0 0
        %302 = vperm.xlu0 %301, %v299
        %v303 = vpop.permute.xlu0 %302
        %v305 = vsub.f32 %v256, %v303
        %v306 = vsub.f32 %v269, %v303
        %v307 = vmul.f32 %v305, %v305
        %v308 = vmul.f32 %v306, %v306
        %v309 = vadd.f32 %v307, %v308
        %310 = vadd.xlane.f32.xlu0 %v309
        %v311 = vpop.xlane.xlu0 %310
        %312 = vmatpush.msra.mxu0 0.0
        %313 = vmatpush.msra.mxu0 0.0
        %314 = vmatpush.msra.mxu0 0.0
        %315 = vmatpush.msra.mxu0 0.0
        %316 = vmatpush.msra.mxu0 0.0
        %317 = vmatpush.msra.mxu0 0.0
        %318 = vmatpush.msra.mxu0 0.0
        %319 = vmatpush.msra.mxu0 0.0
        %320 = vmatpush.msra.mxu0 0.0
        %321 = vmatpush.msra.mxu0 0.0
        %322 = vmatpush.msra.mxu0 0.0
        %323 = vmatpush.msra.mxu0 0.0
        %324 = vmatpush.msra.mxu0 0.0
        %325 = vmatpush.msra.mxu0 0.0
        %326 = vmatpush.msra.mxu0 0.0
        %327 = vmatpush.msra.mxu0 %v311
        %328 = vmatmul.f32.gmra.mxu0 %v277
        %v329 = vpop.f32.mrf.mxu0
        %v330 = vadd.f32 0.0, %v329
        %331 = vdwg.mxu0
        %v332 = vmul.f32 %v330, 0.0009765625
        %v333 = vadd.f32 %v332, 1e-05
        %v334 = vrsqrt.pop %v333
        %v335 = vmul.f32 %v334, %v333
        %v336 = vmul.f32 %v335, %v334
        %v337 = vmul.f32 0.5, %v336
        %v338 = vsub.f32 1.5, %v337
        %v339 = vmul.f32 %v334, %v338
        %vm340 = vweird.f32 %v333
        %vm341 = vweird.f32 %v334
        %vm342 = vmor %vm340, %vm341
        %v343 = vsel %vm342, %v334, %v339
        %344 = vrot.lane.b32.xlu0 %v198, 127
        %v345 = vpop.permute.xlu0 %344
        %v347 = vmul.f32 %v343, %v345
        %349 = vset.pattern.permute.xlu0 0
        %350 = vperm.xlu0 %349, %v347
        %v351 = vpop.permute.xlu0 %350
        %v353 = vmul.f32 %v305, %v351
        %v354 = vmul.f32 %v306, %v351
        %355 = vset.pattern.permute.xlu0 2
        %356 = vperm.xlu0 %355, %v198
        %v357 = vpop.permute.xlu0 %356
        %v359 = vadd.f32 %v353, %v357
        %v360 = vadd.f32 %v354, %v357
        %v361 = vmax.f32 %v359, 0.0
        %v362 = vmax.f32 %v360, 0.0
        %363 = vst [vmem:[%s190] sm:$0xff] %v361
        %364 = vst [vmem:[%s190 + $0x8] sm:$0xff] %v362
        %s365 = sand.u32 %s115, 1
        %s366 = scalar_lea.sflag [#allocation3], %s365
        %s367 = sand.u32 %s115, 1
        %s368 = smul.addr %s367, 16
        %s369 = scalar_lea.vmem [#allocation2], %s368
        // Predicated region
        $region37: #{tpu_custom_call.1} parent=35 // pred_check
          %p370 = pneg %p125
        $region38: #{tpu_custom_call.1} parent=35 // pred_check_branch
          %372 = sbr.rel (%p370) target = $region40
        $region39: #{tpu_custom_call.1} parent=35 // pred_region
          %374 = vsyncadd %s366, 0
          %s375 = smul.addr %s18, 2
          %s376 = smul.addr %s375, 8
          %s377 = scalar_lea.hbm %s4, %s376
          %s379 = sshll.u32 %s369, 4
          %s380 = int_to_ptr.vmem [resolvable:$true] %s379
          %s381 = sshll.u32 %s377, 4
          %s382 = int_to_ptr.hbm [resolvable:$true] %s381
          %384 = dma.vmem_to_hbm [thread:$0]  %s380, 256, %s382, %s366
        $region40: #{tpu_custom_call.1} parent=35 // pred_fallthru
          _
      $region36: #{tpu_custom_call.1} parent=5 // pred_fallthru
        _
      %p385 = scmp.le.s32.totalorder 2, %s13
      // Predicated region
      $region41: #{tpu_custom_call.1} parent=5 // pred_check
        %p386 = pneg %p385
      $region42: #{tpu_custom_call.1} parent=5 // pred_check_branch
        %388 = sbr.rel (%p386) target = $region44
      $region43: #{tpu_custom_call.1} parent=5 // pred_region
        %s389 = ssub.s32 %s13, 2
        // Predicated region
        $region45: #{tpu_custom_call.1} parent=43 // pred_check
          %p390 = pneg %p131
        $region46: #{tpu_custom_call.1} parent=43 // pred_check_branch
          %392 = sbr.rel (%p390) target = $region48
        $region47: #{tpu_custom_call.1} parent=43 // pred_region
          %s393 = sand.u32 %s116, 1
          %s394 = scalar_lea.sflag [#allocation3], %s393
          %s395 = sand.u32 %s116, 1
          %s396 = smul.addr %s395, 16
          %s397 = scalar_lea.vmem [#allocation2], %s396
          %399 = dma.done %s394, 256
        $region48: #{tpu_custom_call.1} parent=43 // pred_fallthru
          _
      $region44: #{tpu_custom_call.1} parent=5 // pred_fallthru
        _
    $region6: #{tpu_custom_call.1} parent=1 // loop_footer
      %s17 = sadd.s32 1, %s13
    $region7: #{tpu_custom_call.1} parent=1 // loop_footer_branch
      %12 = sbr.rel target = $region3
    $region8: #{tpu_custom_call.1} parent=1 // loop_exit
      _
    %400 = vsyncpa [#allocation3], 1
    %s401 = scalar_lea.sflag [#allocation3], 1
    %402 = vsyncpa %s401, 1

</llo_original>
